<compile_context>
chip_gen: v6e
topology: v6e:2x2x1
jax: 0.10.0
libtpu: 0.0.40
codegen_flags: <defaults>
</compile_context>

<pallas_src>
import functools

import jax
import jax.numpy as jnp
from jax.experimental import pallas as pl
from jax.experimental.pallas import tpu as pltpu

CP = 128   # padded hidden channels (32 -> 128): lane-dense conv activations, N=128 MXU tile
NP = 128   # padded classifier width (10 -> 128): lane-dense final store


# ------------------------- fused Pallas kernel -------------------------

def _fused_forward_kernel(p_ref, w1_ref, b1_ref, w2_ref, b2_ref, o_ref, acc_ref, *, n_pad):
    """One grid step = one spatial tile of one batch tile.

    grid = (B//TB, n_spatial_tiles); axis 0 'parallel', axis 1 'arbitrary' (reduction, innermost).
      p_ref  : (TB, TS, K) bf16  im2col patch tile (K unpadded in HBM; lane-padded only in VMEM)
      w1_ref : (K, CP)     bf16  conv weights (zero-padded columns)
      b1_ref : (1, CP)     f32   conv bias    (zero-padded)
      w2_ref : (CP, NP)    bf16  classifier W^T with 1/HW folded in (zero-padded)
      b2_ref : (1, NP)     f32   classifier bias (zero-padded)
      o_ref  : (1, TB, NP) f32   logits for this batch tile
      acc_ref: (TB, 8, CP) f32   per-sublane running pooled sums (reduced 8->1 only at finalize)
    """
    s = pl.program_id(1)
    tb, ts, k = p_ref.shape
    cp = w1_ref.shape[1]

    @pl.when(s == 0)
    def _init():
        acc_ref[...] = jnp.zeros_like(acc_ref)

    # conv-as-matmul + bias + ReLU for this tile (single MXU dot, f32 accumulation)
    p = p_ref[...].reshape(tb * ts, k)                                      # free reshape
    h = jnp.dot(p, w1_ref[...], preferred_element_type=jnp.float32)        # (TB*TS, CP)
    h = jnp.maximum(h + b1_ref[...], 0.0)

    # accumulate the global-average-pool numerator (VPU-only adds; no per-step XLU reduce)
    acc_ref[...] += jnp.sum(h.reshape(tb, ts // 8, 8, cp), axis=1)          # (TB, 8, CP)

    @pl.when(s == pl.num_programs(1) - 1)
    def _finalize():
        pooled = jnp.sum(acc_ref[...], axis=1)                              # (TB, CP), one 8->1
        if n_pad:
            # zero-padded spatial rows each contributed relu(b1); remove them exactly
            pooled = pooled - n_pad * jnp.maximum(b1_ref[...], 0.0)
        # 1/HW is folded into w2, so this is mean-pool + linear in one bf16 MXU pass
        logits = jnp.dot(pooled.astype(w2_ref.dtype), w2_ref[...],
                         preferred_element_type=jnp.float32) + b2_ref[...]  # (TB, NP)
        o_ref[...] = logits[None]


# ------------------------- tiling heuristics -------------------------

def _choose_batch_tile(b):
    """Prefer TB=8 (full sublanes) while keeping >=2 parallel grid steps (v7x has 2 TCs);
    otherwise the largest power-of-two divisor that does; tiny batches fall back."""
    for tb in (8, 4, 2):
        if b % tb == 0 and b // tb >= 2:
            return tb
    return 1 if b >= 2 else b


def _choose_spatial_tile(hw, cap):
    """Pick TS (multiple of 8) and the number of zero rows padding HW up to a TS multiple."""
    cap = max(8, (min(cap, ((hw + 7) // 8) * 8) // 8) * 8)
    best = 0
    for ts in range(8, min(cap, hw) + 1, 8):       # largest mult-of-8 divisor -> no padding
        if hw % ts == 0:
            best = ts
    if best >= min(cap, 256, hw):
        return best, 0
    ts = cap
    return ts, (-hw) % ts


# ------------------------- wrapper -------------------------

def init_params(key, c_in=4, c_hidden=32, num_classes=10):
    k1, k2, k3, k4 = jax.random.split(key, 4)
    w1 = jax.random.normal(k1, (c_hidden, c_in, 3, 3), jnp.float32) * 0.1   # PyTorch OIHW
    b1 = jax.random.normal(k2, (c_hidden,), jnp.float32) * 0.01
    w2 = jax.random.normal(k3, (num_classes, c_hidden), jnp.float32) * 0.1  # PyTorch (out, in)
    b2 = jax.random.normal(k4, (num_classes,), jnp.float32) * 0.01
    return {"w1": w1, "b1": b1, "w2": w2, "b2": b2}


def continual_model_forward(x, params, *, ts_cap=None):
    """x: (B, C, H, W) float32 (NCHW, matching the PyTorch module). Returns (B, num_classes) f32."""
    B, C, H, W = x.shape
    w1, b1, w2, b2 = params["w1"], params["b1"], params["w2"], params["b2"]
    Cout = w1.shape[0]
    num_classes = w2.shape[0]
    K = C * 9
    HW = H * W
    assert Cout <= CP and num_classes <= NP

    TB = _choose_batch_tile(B)
    cap = ts_cap if ts_cap is not None else (8192 // TB)      # keep TB*TS bounded (VMEM headroom)
    TS, hw_pad = _choose_spatial_tile(HW, cap)
    HWp = HW + hw_pad
    n_bt, n_s = B // TB, HWp // TS

    # --- im2col (XLA glue), built directly in (B, HW, K) order, bf16 before the 9x expansion ---
    x_nhwc = jnp.transpose(x, (0, 2, 3, 1)).astype(jnp.bfloat16)            # (B, H, W, C)
    xp = jnp.pad(x_nhwc, ((0, 0), (1, 1), (1, 1), (0, 0)))
    cols = [xp[:, dh:dh + H, dw:dw + W, :] for dh in range(3) for dw in range(3)]
    patches = jnp.concatenate(cols, axis=-1).reshape(B, HW, K)              # K order: (kh, kw, c)
    if hw_pad:
        patches = jnp.pad(patches, ((0, 0), (0, hw_pad), (0, 0)))           # zero rows (corrected)

    # --- parameters (zero padding only, so logits are exact up to bf16 operand rounding) ---
    w1_mat = jnp.transpose(w1, (2, 3, 1, 0)).reshape(K, Cout)               # (kh, kw, c) x Cout
    w1p = (jnp.zeros((K, CP), jnp.float32).at[:, :Cout].set(w1_mat)).astype(jnp.bfloat16)
    b1p = jnp.zeros((1, CP), jnp.float32).at[0, :Cout].set(b1)
    w2p = (jnp.zeros((CP, NP), jnp.float32)
           .at[:Cout, :num_classes].set(w2.T * (1.0 / HW))).astype(jnp.bfloat16)   # fold mean scale
    b2p = jnp.zeros((1, NP), jnp.float32).at[0, :num_classes].set(b2)

    kernel = functools.partial(_fused_forward_kernel, n_pad=hw_pad)

    out = pl.pallas_call(
        kernel,
        grid=(n_bt, n_s),
        in_specs=[
            pl.BlockSpec((TB, TS, K), lambda bt, s: (bt, s, 0)),   # streamed patch tiles
            pl.BlockSpec((K, CP), lambda bt, s: (0, 0)),           # conv weights (resident)
            pl.BlockSpec((1, CP), lambda bt, s: (0, 0)),           # conv bias
            pl.BlockSpec((CP, NP), lambda bt, s: (0, 0)),          # classifier weights (scaled)
            pl.BlockSpec((1, NP), lambda bt, s: (0, 0)),           # classifier bias
        ],
        out_specs=pl.BlockSpec((1, TB, NP), lambda bt, s: (bt, 0, 0)),
        out_shape=jax.ShapeDtypeStruct((n_bt, TB, NP), jnp.float32),
        scratch_shapes=[pltpu.VMEM((TB, 8, CP), jnp.float32)],
        compiler_params=pltpu.CompilerParams(
            dimension_semantics=("parallel", "arbitrary"),
            vmem_limit_bytes=32 * 1024 * 1024,
        ),
    )(patches, w1p, b1p, w2p, b2p)

    return out.reshape(B, NP)[:, :num_classes]


def _reference_forward(x, params):
    """Pure-JAX reference mirroring the kernel's bf16 conv-operand cast (classifier in f32)."""
    B, C, H, W = x.shape
    w1, b1, w2, b2 = params["w1"], params["b1"], params["w2"], params["b2"]
    Cout = w1.shape[0]
    xn = jnp.transpose(x, (0, 2, 3, 1)).astype(jnp.bfloat16)
    xp = jnp.pad(xn, ((0, 0), (1, 1), (1, 1), (0, 0)))
    cols = [xp[:, dh:dh + H, dw:dw + W, :] for dh in range(3) for dw in range(3)]
    pat = jnp.concatenate(cols, axis=-1).reshape(B, H * W, C * 9)
    w1m = jnp.transpose(w1, (2, 3, 1, 0)).reshape(C * 9, Cout).astype(jnp.bfloat16)
    h = jnp.maximum(jnp.einsum("bsk,kc->bsc", pat, w1m,
                               preferred_element_type=jnp.float32) + b1, 0.0)
    return h.mean(axis=1) @ w2.T + b2


# TODO(synk): optimizer (SGD), wandb logging, checkpoint loading (load_cp) and PIL-based
# data-augmentation transforms are training/IO-side and have no forward-pass Pallas equivalent.

if __name__ == "__main__":
    key = jax.random.PRNGKey(0)
    kx, kp, kx2 = jax.random.split(key, 3)

    # Small shapes consistent with the module: batch=2, channels=4, spatial=16,
    # n_task=5, cpt=2 -> num_classes=10, hidden conv channels=32.
    B, C, H, W = 2, 4, 16, 16
    n_task, cpt = 5, 2
    num_classes = n_task * cpt
    c_hidden = 32

    x = jax.random.normal(kx, (B, C, H, W), jnp.float32)
    params = init_params(kp, c_in=C, c_hidden=c_hidden, num_classes=num_classes)

    logits = continual_model_forward(x, params)
    jax.block_until_ready(logits)
    assert logits.shape == (B, num_classes) and logits.dtype == jnp.float32
    ref = _reference_forward(x, params)
    assert jnp.allclose(logits, ref, rtol=2e-2, atol=2e-2), float(jnp.max(jnp.abs(logits - ref)))

    # Exercise the multi-step spatial reduction path (TS=64 -> 4 accumulate steps).
    logits2 = continual_model_forward(x, params, ts_cap=64)
    assert jnp.allclose(logits2, ref, rtol=2e-2, atol=2e-2), \
        float(jnp.max(jnp.abs(logits2 - ref)))

    # Exercise batch tiling (B=4 -> TB=2) and the HW-padding correction (10x10 -> HW=100 -> 104).
    x3 = jax.random.normal(kx2, (4, C, 10, 10), jnp.float32)
    logits3 = continual_model_forward(x3, params)
    ref3 = _reference_forward(x3, params)
    assert jnp.allclose(logits3, ref3, rtol=2e-2, atol=2e-2), \
        float(jnp.max(jnp.abs(logits3 - ref3)))

    print("KERNEL_OK")
</pallas_src>

<mosaic_0001>
module attributes {stable_mosaic.version = 11 : i64} {
  func.func @_fused_forward_kernel(%arg0: i32, %arg1: i32, %arg2: memref<1x256x36xbf16, #tpu.memory_space<vmem>>, %arg3: memref<36x128xbf16, #tpu.memory_space<vmem>>, %arg4: memref<1x128xf32, #tpu.memory_space<vmem>>, %arg5: memref<128x128xbf16, #tpu.memory_space<vmem>>, %arg6: memref<1x128xf32, #tpu.memory_space<vmem>>, %arg7: memref<1x1x128xf32, #tpu.memory_space<vmem>>, %arg8: memref<1x8x128xf32, #tpu.memory_space<vmem>>) attributes {dimension_semantics = [#tpu.dimension_semantics<parallel>, #tpu.dimension_semantics<arbitrary>], iteration_bounds = array<i64: 2, 1>, scalar_prefetch = 0 : i64, scratch_operands = 1 : i64, tpu.core_type = #tpu.core_type<tc>, window_params = [{transform_indices = @transform_0, window_bounds = array<i64: 1, 256, 36>}, {pipeline_mode = #tpu.pipeline_mode<synchronous>, transform_indices = @transform_1, window_bounds = array<i64: 36, 128>}, {pipeline_mode = #tpu.pipeline_mode<synchronous>, transform_indices = @transform_2, window_bounds = array<i64: 1, 128>}, {pipeline_mode = #tpu.pipeline_mode<synchronous>, transform_indices = @transform_3, window_bounds = array<i64: 128, 128>}, {pipeline_mode = #tpu.pipeline_mode<synchronous>, transform_indices = @transform_4, window_bounds = array<i64: 1, 128>}, {transform_indices = @transform_5, window_bounds = array<i64: 1, 1, 128>}]} {
    %c0_i32 = arith.constant 0 : i32
    %0 = arith.cmpi eq, %arg1, %c0_i32 : i32
    %1 = arith.extui %0 : i1 to i32
    %c0_i32_0 = arith.constant 0 : i32
    %2 = arith.cmpi ne, %1, %c0_i32_0 : i32
    scf.if %2 {
      %cst_17 = arith.constant 0.000000e+00 : f32
      %20 = vector.broadcast %cst_17 : f32 to vector<1x8x128xf32>
      %c0_18 = arith.constant 0 : index
      %c0_19 = arith.constant 0 : index
      %c0_20 = arith.constant 0 : index
      %21 = vector.load %arg8[%c0_18, %c0_19, %c0_20] : memref<1x8x128xf32, #tpu.memory_space<vmem>>, vector<1x8x128xf32>
      tpu.vector_store %arg8[%c0_18, %c0_19, %c0_20], %20 {strides = array<i32>} : memref<1x8x128xf32, #tpu.memory_space<vmem>>, vector<1x8x128xf32>,
    } else {
    }
    %c0 = arith.constant 0 : index
    %c0_1 = arith.constant 0 : index
    %c0_2 = arith.constant 0 : index
    %3 = vector.load %arg2[%c0, %c0_1, %c0_2] : memref<1x256x36xbf16, #tpu.memory_space<vmem>>, vector<1x256x36xbf16>
    %4 = vector.shape_cast %3 : vector<1x256x36xbf16> to vector<256x36xbf16>
    %c0_3 = arith.constant 0 : index
    %c0_4 = arith.constant 0 : index
    %5 = vector.load %arg3[%c0_3, %c0_4] : memref<36x128xbf16, #tpu.memory_space<vmem>>, vector<36x128xbf16>
    %cst = arith.constant dense<0.000000e+00> : vector<256x128xf32>
    %6 = tpu.matmul %4, %5, %cst {dimension_numbers = #tpu.dot_dimension_numbers<[1], [0], [0], [1], [0, 0, 1, 1], [], []>} : vector<256x36xbf16>, vector<36x128xbf16>, vector<256x128xf32> -> vector<256x128xf32>
    %c0_5 = arith.constant 0 : index
    %c0_6 = arith.constant 0 : index
    %7 = vector.load %arg4[%c0_5, %c0_6] : memref<1x128xf32, #tpu.memory_space<vmem>>, vector<1x128xf32>
    %8 = vector.broadcast %7 : vector<1x128xf32> to vector<256x128xf32>
    %9 = arith.addf %6, %8 : vector<256x128xf32>
    %cst_7 = arith.constant 0.000000e+00 : f32
    %10 = vector.broadcast %cst_7 : f32 to vector<256x128xf32>
    %11 = arith.maximumf %9, %10 : vector<256x128xf32>
    %c0_8 = arith.constant 0 : index
    %c0_9 = arith.constant 0 : index
    %c0_10 = arith.constant 0 : index
    %12 = vector.load %arg8[%c0_8, %c0_9, %c0_10] : memref<1x8x128xf32, #tpu.memory_space<vmem>>, vector<1x8x128xf32>
    %13 = vector.shape_cast %11 : vector<256x128xf32> to vector<1x32x8x128xf32>
    %cst_11 = arith.constant dense<0.000000e+00> : vector<1x8x128xf32>
    %14 = vector.multi_reduction <add>, %13, %cst_11 [1] : vector<1x32x8x128xf32> to vector<1x8x128xf32>
    %15 = arith.addf %12, %14 : vector<1x8x128xf32>
    %c0_12 = arith.constant 0 : index
    %c0_13 = arith.constant 0 : index
    %c0_14 = arith.constant 0 : index
    %16 = vector.load %arg8[%c0_12, %c0_13, %c0_14] : memref<1x8x128xf32, #tpu.memory_space<vmem>>, vector<1x8x128xf32>
    tpu.vector_store %arg8[%c0_12, %c0_13, %c0_14], %15 {strides = array<i32>} : memref<1x8x128xf32, #tpu.memory_space<vmem>>, vector<1x8x128xf32>,
    %c0_i32_15 = arith.constant 0 : i32
    %17 = arith.cmpi eq, %arg1, %c0_i32_15 : i32
    %18 = arith.extui %17 : i1 to i32
    %c0_i32_16 = arith.constant 0 : i32
    %19 = arith.cmpi ne, %18, %c0_i32_16 : i32
    scf.if %19 {
      %c0_17 = arith.constant 0 : index
      %c0_18 = arith.constant 0 : index
      %c0_19 = arith.constant 0 : index
      %20 = vector.load %arg8[%c0_17, %c0_18, %c0_19] : memref<1x8x128xf32, #tpu.memory_space<vmem>>, vector<1x8x128xf32>
      %cst_20 = arith.constant dense<0.000000e+00> : vector<1x128xf32>
      %21 = vector.multi_reduction <add>, %20, %cst_20 [1] : vector<1x8x128xf32> to vector<1x128xf32>
      %22 = arith.truncf %21 : vector<1x128xf32> to vector<1x128xbf16>
      %c0_21 = arith.constant 0 : index
      %c0_22 = arith.constant 0 : index
      %23 = vector.load %arg5[%c0_21, %c0_22] : memref<128x128xbf16, #tpu.memory_space<vmem>>, vector<128x128xbf16>
      %cst_23 = arith.constant dense<0.000000e+00> : vector<1x128xf32>
      %24 = tpu.matmul %22, %23, %cst_23 {dimension_numbers = #tpu.dot_dimension_numbers<[1], [0], [0], [1], [0, 0, 1, 1], [], []>} : vector<1x128xbf16>, vector<128x128xbf16>, vector<1x128xf32> -> vector<1x128xf32>
      %c0_24 = arith.constant 0 : index
      %c0_25 = arith.constant 0 : index
      %25 = vector.load %arg6[%c0_24, %c0_25] : memref<1x128xf32, #tpu.memory_space<vmem>>, vector<1x128xf32>
      %26 = arith.addf %24, %25 : vector<1x128xf32>
      %27 = vector.shape_cast %26 : vector<1x128xf32> to vector<1x1x128xf32>
      %c0_26 = arith.constant 0 : index
      %c0_27 = arith.constant 0 : index
      %c0_28 = arith.constant 0 : index
      %28 = vector.load %arg7[%c0_26, %c0_27, %c0_28] : memref<1x1x128xf32, #tpu.memory_space<vmem>>, vector<1x1x128xf32>
      tpu.vector_store %arg7[%c0_26, %c0_27, %c0_28], %27 {strides = array<i32>} : memref<1x1x128xf32, #tpu.memory_space<vmem>>, vector<1x1x128xf32>,
    } else {
    }
    return
  }
  func.func @transform_0(%arg0: i32, %arg1: i32) -> (i32, i32, i32) {
    %c0_i32 = arith.constant 0 : i32
    %c0_i32_0 = arith.constant 0 : i32
    return %arg0, %arg1, %c0_i32 : i32, i32, i32
  }
  func.func @transform_1(%arg0: i32, %arg1: i32) -> (i32, i32) {
    %c0_i32 = arith.constant 0 : i32
    %c0_i32_0 = arith.constant 0 : i32
    %c0_i32_1 = arith.constant 0 : i32
    return %c0_i32, %c0_i32_0 : i32, i32
  }
  func.func @transform_2(%arg0: i32, %arg1: i32) -> (i32, i32) {
    %c0_i32 = arith.constant 0 : i32
    %c0_i32_0 = arith.constant 0 : i32
    %c0_i32_1 = arith.constant 0 : i32
    return %c0_i32, %c0_i32_0 : i32, i32
  }
  func.func @transform_3(%arg0: i32, %arg1: i32) -> (i32, i32) {
    %c0_i32 = arith.constant 0 : i32
    %c0_i32_0 = arith.constant 0 : i32
    %c0_i32_1 = arith.constant 0 : i32
    return %c0_i32, %c0_i32_0 : i32, i32
  }
  func.func @transform_4(%arg0: i32, %arg1: i32) -> (i32, i32) {
    %c0_i32 = arith.constant 0 : i32
    %c0_i32_0 = arith.constant 0 : i32
    %c0_i32_1 = arith.constant 0 : i32
    return %c0_i32, %c0_i32_0 : i32, i32
  }
  func.func @transform_5(%arg0: i32, %arg1: i32) -> (i32, i32, i32) {
    %c0_i32 = arith.constant 0 : i32
    %c0_i32_0 = arith.constant 0 : i32
    %c0_i32_1 = arith.constant 0 : i32
    return %arg0, %c0_i32, %c0_i32_0 : i32, i32, i32
  }
}

</mosaic_0001>

<llo_original>
// kernel: tpu_custom_call.1
$region0: #{tpu_custom_call.1}
  #allocation0 [shape = 'u32[]', space=smem, size = 0x4, offset = 0x4, fixed_abs, tag = 'smem constant byte address 0x4 - core index']
  #allocation1 [shape = 'u32[144,128]{1,0:T(1,128)}', space=vmem, size = 0x12000, scoped, tag = 'internal scratch']
  #allocation2 [shape = 'f32[1,8,128]{2,1,0:T(8,128)}', space=vmem, size = 0x1000, scoped, tag = 'scratch operand']
  %s0 = inlined_call_operand.vmem [shape: bf16[2,256,36], index: 0, kind: input, shape index: {}]
  %s1 = inlined_call_operand.vmem [shape: bf16[36,128], index: 1, kind: input, shape index: {}]
  %s2 = inlined_call_operand.vmem [shape: f32[1,128], index: 2, kind: input, shape index: {}]
  %s3 = inlined_call_operand.vmem [shape: bf16[128,128], index: 3, kind: input, shape index: {}]
  %s4 = inlined_call_operand.vmem [shape: f32[1,128], index: 4, kind: input, shape index: {}]
  %s5 = inlined_call_operand.hbm [shape: f32[2,1,128], index: 5, kind: output, shape index: {}]
  %s6 = sld [smem:[#allocation0]]
  $region61: #{tpu_custom_call.1} parent=0
    _
  %s8 = ssub.s32 1, %s6
  %s9 = scalar_select 0, %s8, %s6
  $region1: #{tpu_custom_call.1} parent=0
    #allocation3 [shape = 'u8[1024]{0}', space=vmem, size = 0x400, scoped, tag = 'output window, operand 0']
    #allocation4 [shape = 's32[2]{0}', space=sflag, size = 0x8, scoped, tag = 'scoped memory for tpu_custom_call.1']
    %10 = vsyncpa [#allocation4], 0
    %s11 = scalar_lea.sflag [#allocation4], 1
    %12 = vsyncpa %s11, 0
    loop: start=0, step=1, limit=4
    $region2: #{tpu_custom_call.1} parent=1 // loop_pre_header
      _
    $region3: #{tpu_custom_call.1} parent=1 // loop_header
      %s14 = sphi 0, %s18
      %p15 = scmp.ge.s32.totalorder %s14, 4
      %s21 = sphi 0, %s33
      %s22 = sphi 0, %s29
      %s23 = sphi 0, %s21
      %s24 = sphi 0, %s22
      %s25 = sphi 0, %s23
      %s26 = sphi 0, %s24
      %s38 = sphi 0, %s40
      %s41 = sphi 0, %s38
      %s42 = sphi 0, %s41
      %s58 = sphi 0, %s42
      %s62 = sphi 0, %s62
      %s64 = sphi 0, %s62
      %s65 = sphi 0, %s64
      %s79 = sphi 0, %s65
      %s83 = sphi 0, %s83
      %s85 = sphi 0, %s83
      %s86 = sphi 0, %s85
      %s100 = sphi 0, %s86
      %s104 = sphi 0, %s104
      %s106 = sphi 0, %s104
      %s107 = sphi 0, %s106
      %s121 = sphi 0, %s107
      %s125 = sphi 0, %s125
      %s127 = sphi 0, %s125
      %s128 = sphi 0, %s127
      %s142 = sphi 0, %s128
      %s148 = sphi 0, %s150
      %s151 = sphi 0, %s148
      %s152 = sphi 0, %s151
      %s168 = sphi 0, %s152
    $region4: #{tpu_custom_call.1} parent=1 // loop_header_branch
      %17 = sbr.rel (%p15) target = $region8
    $region5: #{tpu_custom_call.1} parent=1 // loop_body
      %s19 = ssub.s32 %s14, 1
      %s20 = ssub.s32 %s14, 2
      %s27 = sadd.s32 1, %s22
      %p28 = scmp.ge.s32.totalorder %s27, 1
      %s29 = scalar_select %p28, 0, %s27
      %s30 = sadd.s32 1, %s21
      %s31 = scalar_select %p28, %s30, %s21
      %p32 = scmp.ge.s32.totalorder %s31, 2
      %s33 = scalar_select %p32, 0, %s31
      %s34 = ssub.s32 %s21, %s33
      %s35 = ssub.s32 %s22, %s29
      %s36 = sor.u32 %s34, %s35
      %p37 = scmp.eq.s32.totalorder %s36, 0
      %s39 = sadd.s32 %s38, 1
      %s40 = scalar_select %p37, %s38, %s39
      %p43 = pneg %p37
      %p44 = scmp.eq.s32.totalorder %s14, 1
      %p45 = por %p43, %p44
      %p46 = scmp.ne.s32.totalorder %s38, %s41
      %p47 = scmp.eq.s32.totalorder %s14, 0
      %p48 = por %p46, %p47
      %p49 = scmp.ne.s32.totalorder %s38, %s41
      %p50 = scmp.eq.s32.totalorder %s19, 1
      %p51 = por %p49, %p50
      %p52 = scmp.ne.s32.totalorder %s41, %s42
      %p53 = scmp.eq.s32.totalorder %s19, 0
      %p54 = por %p52, %p53
      %p55 = scmp.ne.s32.totalorder %s41, %s42
      %p56 = scmp.eq.s32.totalorder %s20, 1
      %p57 = por %p55, %p56
      %p59 = scmp.ne.s32.totalorder %s42, %s58
      %p60 = scmp.eq.s32.totalorder %s20, 0
      %p61 = por %p59, %p60
      %s63 = sadd.s32 %s62, 1
      %p66 = scmp.eq.s32.totalorder %s14, 1
      %p67 = scmp.ne.s32.totalorder %s62, %s64
      %p68 = scmp.eq.s32.totalorder %s14, 0
      %p69 = por %p67, %p68
      %p70 = scmp.ne.s32.totalorder %s62, %s64
      %p71 = scmp.eq.s32.totalorder %s19, 1
      %p72 = por %p70, %p71
      %p73 = scmp.ne.s32.totalorder %s64, %s65
      %p74 = scmp.eq.s32.totalorder %s19, 0
      %p75 = por %p73, %p74
      %p76 = scmp.ne.s32.totalorder %s64, %s65
      %p77 = scmp.eq.s32.totalorder %s20, 1
      %p78 = por %p76, %p77
      %p80 = scmp.ne.s32.totalorder %s65, %s79
      %p81 = scmp.eq.s32.totalorder %s20, 0
      %p82 = por %p80, %p81
      %s84 = sadd.s32 %s83, 1
      %p87 = scmp.eq.s32.totalorder %s14, 1
      %p88 = scmp.ne.s32.totalorder %s83, %s85
      %p89 = scmp.eq.s32.totalorder %s14, 0
      %p90 = por %p88, %p89
      %p91 = scmp.ne.s32.totalorder %s83, %s85
      %p92 = scmp.eq.s32.totalorder %s19, 1
      %p93 = por %p91, %p92
      %p94 = scmp.ne.s32.totalorder %s85, %s86
      %p95 = scmp.eq.s32.totalorder %s19, 0
      %p96 = por %p94, %p95
      %p97 = scmp.ne.s32.totalorder %s85, %s86
      %p98 = scmp.eq.s32.totalorder %s20, 1
      %p99 = por %p97, %p98
      %p101 = scmp.ne.s32.totalorder %s86, %s100
      %p102 = scmp.eq.s32.totalorder %s20, 0
      %p103 = por %p101, %p102
      %s105 = sadd.s32 %s104, 1
      %p108 = scmp.eq.s32.totalorder %s14, 1
      %p109 = scmp.ne.s32.totalorder %s104, %s106
      %p110 = scmp.eq.s32.totalorder %s14, 0
      %p111 = por %p109, %p110
      %p112 = scmp.ne.s32.totalorder %s104, %s106
      %p113 = scmp.eq.s32.totalorder %s19, 1
      %p114 = por %p112, %p113
      %p115 = scmp.ne.s32.totalorder %s106, %s107
      %p116 = scmp.eq.s32.totalorder %s19, 0
      %p117 = por %p115, %p116
      %p118 = scmp.ne.s32.totalorder %s106, %s107
      %p119 = scmp.eq.s32.totalorder %s20, 1
      %p120 = por %p118, %p119
      %p122 = scmp.ne.s32.totalorder %s107, %s121
      %p123 = scmp.eq.s32.totalorder %s20, 0
      %p124 = por %p122, %p123
      %s126 = sadd.s32 %s125, 1
      %p129 = scmp.eq.s32.totalorder %s14, 1
      %p130 = scmp.ne.s32.totalorder %s125, %s127
      %p131 = scmp.eq.s32.totalorder %s14, 0
      %p132 = por %p130, %p131
      %p133 = scmp.ne.s32.totalorder %s125, %s127
      %p134 = scmp.eq.s32.totalorder %s19, 1
      %p135 = por %p133, %p134
      %p136 = scmp.ne.s32.totalorder %s127, %s128
      %p137 = scmp.eq.s32.totalorder %s19, 0
      %p138 = por %p136, %p137
      %p139 = scmp.ne.s32.totalorder %s127, %s128
      %p140 = scmp.eq.s32.totalorder %s20, 1
      %p141 = por %p139, %p140
      %p143 = scmp.ne.s32.totalorder %s128, %s142
      %p144 = scmp.eq.s32.totalorder %s20, 0
      %p145 = por %p143, %p144
      %s146 = ssub.s32 %s21, %s33
      %p147 = scmp.eq.s32.totalorder %s146, 0
      %s149 = sadd.s32 %s148, 1
      %s150 = scalar_select %p147, %s148, %s149
      %p153 = pneg %p147
      %p154 = scmp.eq.s32.totalorder %s14, 1
      %p155 = por %p153, %p154
      %p156 = scmp.ne.s32.totalorder %s148, %s151
      %p157 = scmp.eq.s32.totalorder %s14, 0
      %p158 = por %p156, %p157
      %p159 = scmp.ne.s32.totalorder %s148, %s151
      %p160 = scmp.eq.s32.totalorder %s19, 1
      %p161 = por %p159, %p160
      %p162 = scmp.ne.s32.totalorder %s151, %s152
      %p163 = scmp.eq.s32.totalorder %s19, 0
      %p164 = por %p162, %p163
      %p165 = scmp.ne.s32.totalorder %s151, %s152
      %p166 = scmp.eq.s32.totalorder %s20, 1
      %p167 = por %p165, %p166
      %p169 = scmp.ne.s32.totalorder %s152, %s168
      %p170 = scmp.eq.s32.totalorder %s20, 0
      %p171 = por %p169, %p170
      %p172 = scmp.le.s32.totalorder 1, %s14
      %p173 = scmp.lt.s32.totalorder %s14, 3
      %p174 = pnand %p172, %p173
      %p175 = pneg %p174
      // Predicated region
      $region9: #{tpu_custom_call.1} parent=5 // pred_check
        _
      $region10: #{tpu_custom_call.1} parent=5 // pred_check_branch
        %177 = sbr.rel (%p174) target = $region12
      $region11: #{tpu_custom_call.1} parent=5 // pred_region
        %s178 = ssub.s32 %s14, 1
        // Predicated region
        $region13: #{tpu_custom_call.1} parent=11 // pred_check
          %p179 = pneg %p75
        $region14: #{tpu_custom_call.1} parent=11 // pred_check_branch
          %181 = sbr.rel (%p179) target = $region16
        $region15: #{tpu_custom_call.1} parent=11 // pred_region
          _
        $region16: #{tpu_custom_call.1} parent=11 // pred_fallthru
          _
        // Predicated region
        $region17: #{tpu_custom_call.1} parent=11 // pred_check
          %p182 = pneg %p96
        $region18: #{tpu_custom_call.1} parent=11 // pred_check_branch
          %184 = sbr.rel (%p182) target = $region20
        $region19: #{tpu_custom_call.1} parent=11 // pred_region
          _
        $region20: #{tpu_custom_call.1} parent=11 // pred_fallthru
          _
        // Predicated region
        $region21: #{tpu_custom_call.1} parent=11 // pred_check
          %p185 = pneg %p117
        $region22: #{tpu_custom_call.1} parent=11 // pred_check_branch
          %187 = sbr.rel (%p185) target = $region24
        $region23: #{tpu_custom_call.1} parent=11 // pred_region
          _
        $region24: #{tpu_custom_call.1} parent=11 // pred_fallthru
          _
        // Predicated region
        $region25: #{tpu_custom_call.1} parent=11 // pred_check
          %p188 = pneg %p138
        $region26: #{tpu_custom_call.1} parent=11 // pred_check_branch
          %190 = sbr.rel (%p188) target = $region28
        $region27: #{tpu_custom_call.1} parent=11 // pred_region
          _
        $region28: #{tpu_custom_call.1} parent=11 // pred_fallthru
          _
      $region12: #{tpu_custom_call.1} parent=5 // pred_fallthru
        _
      %p191 = scmp.lt.s32.totalorder %s14, 2
      // Predicated region
      $region29: #{tpu_custom_call.1} parent=5 // pred_check
        %p192 = pneg %p191
      $region30: #{tpu_custom_call.1} parent=5 // pred_check_branch
        %194 = sbr.rel (%p192) target = $region32
      $region31: #{tpu_custom_call.1} parent=5 // pred_region
        // Predicated region
        $region33: #{tpu_custom_call.1} parent=31 // pred_check
          %p195 = pneg %p48
        $region34: #{tpu_custom_call.1} parent=31 // pred_check_branch
          %197 = sbr.rel (%p195) target = $region36
        $region35: #{tpu_custom_call.1} parent=31 // pred_region
          %s198 = smul.u32 32, %s22
          %p199 = scmp.lt.s32.totalorder %s21, 1
          %s200 = scalar_select %p199, %s21, 1
          %p201 = scmp.lt.s32.totalorder %s198, 31
          %s202 = scalar_select %p201, %s198, 31
          %s203 = smul.addr %s200, 32
          %s204 = sadd.s32 %s202, %s203
          %s205 = smul.addr %s204, 4
          %s206 = scalar_lea.vmem %s0, %s205
          %s207 = smul.u32 32, %s22
        $region36: #{tpu_custom_call.1} parent=31 // pred_fallthru
          _
      $region32: #{tpu_custom_call.1} parent=5 // pred_fallthru
        _
      %p208 = scmp.le.s32.totalorder 1, %s14
      %p209 = scmp.lt.s32.totalorder %s14, 3
      %p210 = pnand %p208, %p209
      %p211 = pneg %p210
      // Predicated region
      $region37: #{tpu_custom_call.1} parent=5 // pred_check
        _
      $region38: #{tpu_custom_call.1} parent=5 // pred_check_branch
        %213 = sbr.rel (%p210) target = $region40
      $region39: #{tpu_custom_call.1} parent=5 // pred_region
        %s214 = ssub.s32 %s14, 1
        %s215 = smul.u32 32, %s24
        %p216 = scmp.lt.s32.totalorder %s23, 1
        %s217 = scalar_select %p216, %s23, 1
        %p218 = scmp.lt.s32.totalorder %s215, 31
        %s219 = scalar_select %p218, %s215, 31
        %s220 = smul.addr %s217, 32
        %s221 = sadd.s32 %s219, %s220
        %s222 = smul.addr %s221, 4
        %s223 = scalar_lea.vmem %s0, %s222
        %p224 = pneg %p54
        %p225 = pneg %p51
        %p226 = pneg %p75
        %p227 = pneg %p72
        %p228 = pneg %p96
        %p229 = pneg %p93
        %p230 = pneg %p117
        %p231 = pneg %p114
        %p232 = pneg %p138
        %p233 = pneg %p135
        %p234 = pneg %p164
        %p235 = pneg %p161
        %s236 = sand.u32 %s151, 1
        %s237 = scalar_lea.sflag [#allocation4], %s236
        %s238 = sand.u32 %s151, 1
        %s239 = scalar_lea.vmem [#allocation3], %s238
        %s240 = smul.u32 32, %s24
        %p241 = scmp.lt.s32.totalorder %s23, 1
        %s242 = scalar_select %p241, %s23, 1
        %p243 = scmp.lt.s32.totalorder %s240, 31
        %s244 = scalar_select %p243, %s240, 31
        %s245 = smul.addr %s242, 32
        %s246 = sadd.s32 %s244, %s245
        %s247 = smul.addr %s246, 4
        %s248 = scalar_lea.vmem %s0, %s247
        %s249 = smul.u32 32, %s24
        %p251 = scmp.eq.s32.totalorder %s24, 0
        // Predicated region
        $region41: #{tpu_custom_call.1} parent=39 // pred_check
          %p252 = pneg %p251
        $region42: #{tpu_custom_call.1} parent=39 // pred_check_branch
          %254 = sbr.rel (%p252) target = $region44
        $region43: #{tpu_custom_call.1} parent=39 // pred_region
          %255 = vst [vmem:[#allocation2] sm:$0xff] 0.0
        $region44: #{tpu_custom_call.1} parent=39 // pred_fallthru
          _
        %v256 = vld [vmem:[%s248] sm:$0xf]
        %v257 = vld [vmem:[%s248 + $0x4] sm:$0xf]
        %v258 = vld [vmem:[%s248 + $0x8] sm:$0xf]
        %v259 = vld [vmem:[%s248 + $0xc] sm:$0xf]
        %v260 = vld [vmem:[%s248 + $0x10] sm:$0xf]
        %v261 = vld [vmem:[%s248 + $0x14] sm:$0xf]
        %v262 = vld [vmem:[%s248 + $0x18] sm:$0xf]
        %v263 = vld [vmem:[%s248 + $0x1c] sm:$0xf]
        %v264 = vld [vmem:[%s248 + $0x20] sm:$0xf]
        %v265 = vld [vmem:[%s248 + $0x24] sm:$0xf]
        %v266 = vld [vmem:[%s248 + $0x28] sm:$0xf]
        %v267 = vld [vmem:[%s248 + $0x2c] sm:$0xf]
        %v268 = vld [vmem:[%s248 + $0x30] sm:$0xf]
        %v269 = vld [vmem:[%s248 + $0x34] sm:$0xf]
        %v270 = vld [vmem:[%s248 + $0x38] sm:$0xf]
        %v271 = vld [vmem:[%s248 + $0x3c] sm:$0xf]
        %v272 = vld [vmem:[%s248 + $0x40] sm:$0xf]
        %v273 = vld [vmem:[%s248 + $0x44] sm:$0xf]
        %v274 = vld [vmem:[%s248 + $0x48] sm:$0xf]
        %v275 = vld [vmem:[%s248 + $0x4c] sm:$0xf]
        %v276 = vld [vmem:[%s248 + $0x50] sm:$0xf]
        %v277 = vld [vmem:[%s248 + $0x54] sm:$0xf]
        %v278 = vld [vmem:[%s248 + $0x58] sm:$0xf]
        %v279 = vld [vmem:[%s248 + $0x5c] sm:$0xf]
        %v280 = vld [vmem:[%s248 + $0x60] sm:$0xf]
        %v281 = vld [vmem:[%s248 + $0x64] sm:$0xf]
        %v282 = vld [vmem:[%s248 + $0x68] sm:$0xf]
        %v283 = vld [vmem:[%s248 + $0x6c] sm:$0xf]
        %v284 = vld [vmem:[%s248 + $0x70] sm:$0xf]
        %v285 = vld [vmem:[%s248 + $0x74] sm:$0xf]
        %v286 = vld [vmem:[%s248 + $0x78] sm:$0xf]
        %v287 = vld [vmem:[%s248 + $0x7c] sm:$0xf]
        %v288 = vld [vmem:[%s1] sm:$0xf]
        %v289 = vld [vmem:[%s1 + $0x4] sm:$0xf]
        %v290 = vld [vmem:[%s1 + $0x8] sm:$0xf]
        %v291 = vld [vmem:[%s1 + $0xc] sm:$0xf]
        %v292 = vld [vmem:[%s1 + $0x10] sm:$0x3]
        %v293 = vld [vmem:[%s2] sm:$0x1]
        %v295 = vlaneseq
        %v296 = vshrl.u32 %v295, 7
        %v297 = vsub.s32 0, %v296
        %v298 = vrot.slane %v293, %v297
        %v332 = vunpack.c.l.b16 %v256
        %v333 = vunpack.c.l.b16 %v257
        %v334 = vunpack.c.l.b16 %v258
        %v335 = vunpack.c.l.b16 %v259
        %v336 = vunpack.c.l.b16 %v260
        %v337 = vunpack.c.l.b16 %v261
        %v338 = vunpack.c.l.b16 %v262
        %v339 = vunpack.c.l.b16 %v263
        %v340 = vunpack.c.l.b16 %v264
        %v341 = vunpack.c.l.b16 %v265
        %v342 = vunpack.c.l.b16 %v266
        %v343 = vunpack.c.l.b16 %v267
        %v344 = vunpack.c.l.b16 %v268
        %v345 = vunpack.c.l.b16 %v269
        %v346 = vunpack.c.l.b16 %v270
        %v347 = vunpack.c.l.b16 %v271
        %v348 = vunpack.c.l.b16 %v272
        %v349 = vunpack.c.l.b16 %v273
        %v350 = vunpack.c.l.b16 %v274
        %v351 = vunpack.c.l.b16 %v275
        %v352 = vunpack.c.l.b16 %v276
        %v353 = vunpack.c.l.b16 %v277
        %v354 = vunpack.c.l.b16 %v278
        %v355 = vunpack.c.l.b16 %v279
        %v356 = vunpack.c.l.b16 %v280
        %v357 = vunpack.c.l.b16 %v281
        %v358 = vunpack.c.l.b16 %v282
        %v359 = vunpack.c.l.b16 %v283
        %v360 = vunpack.c.l.b16 %v284
        %v361 = vunpack.c.l.b16 %v285
        %v362 = vunpack.c.l.b16 %v286
        %v363 = vunpack.c.l.b16 %v287
        %v364 = vpack.c.b16 %v333, %v332
        %v365 = vpack.c.b16 %v335, %v334
        %v366 = vpack.c.b16 %v337, %v336
        %v367 = vpack.c.b16 %v339, %v338
        %v368 = vpack.c.b16 %v341, %v340
        %v369 = vpack.c.b16 %v343, %v342
        %v370 = vpack.c.b16 %v345, %v344
        %v371 = vpack.c.b16 %v347, %v346
        %v372 = vpack.c.b16 %v349, %v348
        %v373 = vpack.c.b16 %v351, %v350
        %v374 = vpack.c.b16 %v353, %v352
        %v375 = vpack.c.b16 %v355, %v354
        %v376 = vpack.c.b16 %v357, %v356
        %v377 = vpack.c.b16 %v359, %v358
        %v378 = vpack.c.b16 %v361, %v360
        %v379 = vpack.c.b16 %v363, %v362
        %v385 = vunpack.c.l.b16 %v288
        %v386 = vunpack.c.l.b16 %v289
        %v387 = vunpack.c.l.b16 %v290
        %v388 = vunpack.c.l.b16 %v291
        %v389 = vunpack.c.l.b16 %v292
        %v390 = vpack.c.b16 %v386, %v385
        %v391 = vpack.c.b16 %v388, %v387
        %v392 = vpack.c.b16 %v389, %v389
        %vm395 = vcmask 293888
        %v397 = vsel %vm395, %v364, 0
        %v400 = vsel %vm395, %v365, 0
        %v403 = vsel %vm395, %v366, 0
        %v406 = vsel %vm395, %v367, 0
        %v409 = vsel %vm395, %v368, 0
        %v412 = vsel %vm395, %v369, 0
        %v415 = vsel %vm395, %v370, 0
        %v418 = vsel %vm395, %v371, 0
        %v421 = vsel %vm395, %v372, 0
        %v424 = vsel %vm395, %v373, 0
        %v427 = vsel %vm395, %v374, 0
        %v430 = vsel %vm395, %v375, 0
        %v433 = vsel %vm395, %v376, 0
        %v436 = vsel %vm395, %v377, 0
        %v439 = vsel %vm395, %v378, 0
        %v442 = vsel %vm395, %v379, 0
        %vm444 = vcmask 1041408
        %v446 = vsel %vm444, %v392, 0
        %448 = vmatprep.subr.bf16.mxu0 0
        %449 = vmatpush1.bf16.msra.mxu0 0
        %450 = vmatprep.subr.bf16.mxu0 0
        %451 = vmatpush1.bf16.msra.mxu0 0
        %452 = vmatprep.subr.bf16.mxu0 0
        %453 = vmatpush1.bf16.msra.mxu0 0
        %454 = vmatprep.subr.bf16.mxu0 0
        %455 = vmatpush1.bf16.msra.mxu0 0
        %456 = vmatprep.subr.bf16.mxu0 0
        %457 = vmatpush1.bf16.msra.mxu0 0
        %458 = vmatprep.subr.bf16.mxu0 0
        %459 = vmatpush1.bf16.msra.mxu0 %v446
        %460 = vmatprep.subr.bf16.mxu0 0
        %461 = vmatpush1.bf16.msra.mxu0 %v391
        %462 = vmatprep.subr.bf16.mxu0 0
        %463 = vmatpush1.bf16.msra.mxu0 %v390
        %464 = vmatprep.subr.bf16.mxu0 0
        %465 = vmatpush2.bf16.msra.mxu0 0
        %466 = vmatprep.subr.bf16.mxu0 0
        %467 = vmatpush2.bf16.msra.mxu0 0
        %468 = vmatprep.subr.bf16.mxu0 0
        %469 = vmatpush2.bf16.msra.mxu0 0
        %470 = vmatprep.subr.bf16.mxu0 0
        %471 = vmatpush2.bf16.msra.mxu0 0
        %472 = vmatprep.subr.bf16.mxu0 0
        %473 = vmatpush2.bf16.msra.mxu0 0
        %474 = vmatprep.subr.bf16.mxu0 0
        %475 = vmatpush2.bf16.msra.mxu0 0
        %476 = vmatprep.subr.bf16.mxu0 0
        %477 = vmatpush2.bf16.msra.mxu0 0
        %478 = vmatprep.subr.bf16.mxu0 0
        %479 = vmatpush2.bf16.msra.mxu0 0
        %480 = vmatprep.mubr.bf16.mxu0 0
        %481 = vmatmul.mubr.bf16.gmra.mxu0 %v397
        %v482 = vpop.f32.mrf.mxu0
        %v483 = vadd.f32 %v298, %v482
        %v484 = vpop.f32.mrf.mxu0
        %v485 = vpop.f32.mrf.mxu0
        %v486 = vadd.f32 %v298, %v485
        %v487 = vpop.f32.mrf.mxu0
        %488 = vmatprep.mubr.bf16.mxu0 0
        %489 = vmatmul.mubr.bf16.gmra.mxu0 %v400
        %v490 = vpop.f32.mrf.mxu0
        %v491 = vadd.f32 %v298, %v490
        %v492 = vpop.f32.mrf.mxu0
        %v493 = vpop.f32.mrf.mxu0
        %v494 = vadd.f32 %v298, %v493
        %v495 = vpop.f32.mrf.mxu0
        %496 = vmatprep.mubr.bf16.mxu0 0
        %497 = vmatmul.mubr.bf16.gmra.mxu0 %v403
        %v498 = vpop.f32.mrf.mxu0
        %v499 = vadd.f32 %v298, %v498
        %v500 = vpop.f32.mrf.mxu0
        %v501 = vpop.f32.mrf.mxu0
        %v502 = vadd.f32 %v298, %v501
        %v503 = vpop.f32.mrf.mxu0
        %504 = vmatprep.mubr.bf16.mxu0 0
        %505 = vmatmul.mubr.bf16.gmra.mxu0 %v406
        %v506 = vpop.f32.mrf.mxu0
        %v507 = vadd.f32 %v298, %v506
        %v508 = vpop.f32.mrf.mxu0
        %v509 = vpop.f32.mrf.mxu0
        %v510 = vadd.f32 %v298, %v509
        %v511 = vpop.f32.mrf.mxu0
        %512 = vmatprep.mubr.bf16.mxu0 0
        %513 = vmatmul.mubr.bf16.gmra.mxu0 %v409
        %v514 = vpop.f32.mrf.mxu0
        %v515 = vadd.f32 %v298, %v514
        %v516 = vpop.f32.mrf.mxu0
        %v517 = vpop.f32.mrf.mxu0
        %v518 = vadd.f32 %v298, %v517
        %v519 = vpop.f32.mrf.mxu0
        %520 = vmatprep.mubr.bf16.mxu0 0
        %521 = vmatmul.mubr.bf16.gmra.mxu0 %v412
        %v522 = vpop.f32.mrf.mxu0
        %v523 = vadd.f32 %v298, %v522
        %v524 = vpop.f32.mrf.mxu0
        %v525 = vpop.f32.mrf.mxu0
        %v526 = vadd.f32 %v298, %v525
        %v527 = vpop.f32.mrf.mxu0
        %528 = vmatprep.mubr.bf16.mxu0 0
        %529 = vmatmul.mubr.bf16.gmra.mxu0 %v415
        %v530 = vpop.f32.mrf.mxu0
        %v531 = vadd.f32 %v298, %v530
        %v532 = vpop.f32.mrf.mxu0
        %v533 = vpop.f32.mrf.mxu0
        %v534 = vadd.f32 %v298, %v533
        %v535 = vpop.f32.mrf.mxu0
        %536 = vmatprep.mubr.bf16.mxu0 0
        %537 = vmatmul.mubr.bf16.gmra.mxu0 %v418
        %v538 = vpop.f32.mrf.mxu0
        %v539 = vadd.f32 %v298, %v538
        %v540 = vpop.f32.mrf.mxu0
        %v541 = vpop.f32.mrf.mxu0
        %v542 = vadd.f32 %v298, %v541
        %v543 = vpop.f32.mrf.mxu0
        %544 = vmatprep.mubr.bf16.mxu0 0
        %545 = vmatmul.mubr.bf16.gmra.mxu0 %v421
        %v546 = vpop.f32.mrf.mxu0
        %v547 = vadd.f32 %v298, %v546
        %v548 = vpop.f32.mrf.mxu0
        %v549 = vpop.f32.mrf.mxu0
        %v550 = vadd.f32 %v298, %v549
        %v551 = vpop.f32.mrf.mxu0
        %552 = vmatprep.mubr.bf16.mxu0 0
        %553 = vmatmul.mubr.bf16.gmra.mxu0 %v424
        %v554 = vpop.f32.mrf.mxu0
        %v555 = vadd.f32 %v298, %v554
        %v556 = vpop.f32.mrf.mxu0
        %v557 = vpop.f32.mrf.mxu0
        %v558 = vadd.f32 %v298, %v557
        %v559 = vpop.f32.mrf.mxu0
        %560 = vmatprep.mubr.bf16.mxu0 0
        %561 = vmatmul.mubr.bf16.gmra.mxu0 %v427
        %v562 = vpop.f32.mrf.mxu0
        %v563 = vadd.f32 %v298, %v562
        %v564 = vpop.f32.mrf.mxu0
        %v565 = vpop.f32.mrf.mxu0
        %v566 = vadd.f32 %v298, %v565
        %v567 = vpop.f32.mrf.mxu0
        %568 = vmatprep.mubr.bf16.mxu0 0
        %569 = vmatmul.mubr.bf16.gmra.mxu0 %v430
        %v570 = vpop.f32.mrf.mxu0
        %v571 = vadd.f32 %v298, %v570
        %v572 = vpop.f32.mrf.mxu0
        %v573 = vpop.f32.mrf.mxu0
        %v574 = vadd.f32 %v298, %v573
        %v575 = vpop.f32.mrf.mxu0
        %576 = vmatprep.mubr.bf16.mxu0 0
        %577 = vmatmul.mubr.bf16.gmra.mxu0 %v433
        %v578 = vpop.f32.mrf.mxu0
        %v579 = vadd.f32 %v298, %v578
        %v580 = vpop.f32.mrf.mxu0
        %v581 = vpop.f32.mrf.mxu0
        %v582 = vadd.f32 %v298, %v581
        %v583 = vpop.f32.mrf.mxu0
        %584 = vmatprep.mubr.bf16.mxu0 0
        %585 = vmatmul.mubr.bf16.gmra.mxu0 %v436
        %v586 = vpop.f32.mrf.mxu0
        %v587 = vadd.f32 %v298, %v586
        %v588 = vpop.f32.mrf.mxu0
        %v589 = vpop.f32.mrf.mxu0
        %v590 = vadd.f32 %v298, %v589
        %v591 = vpop.f32.mrf.mxu0
        %592 = vmatprep.mubr.bf16.mxu0 0
        %593 = vmatmul.mubr.bf16.gmra.mxu0 %v439
        %v594 = vpop.f32.mrf.mxu0
        %v595 = vadd.f32 %v298, %v594
        %v596 = vpop.f32.mrf.mxu0
        %v597 = vpop.f32.mrf.mxu0
        %v598 = vadd.f32 %v298, %v597
        %v599 = vpop.f32.mrf.mxu0
        %600 = vmatprep.mubr.bf16.mxu0 0
        %601 = vmatmul.mubr.bf16.gmra.mxu0 %v442
        %v602 = vpop.f32.mrf.mxu0
        %v603 = vadd.f32 %v298, %v602
        %v604 = vpop.f32.mrf.mxu0
        %v605 = vpop.f32.mrf.mxu0
        %v606 = vadd.f32 %v298, %v605
        %v607 = vpop.f32.mrf.mxu0
        %608 = vdwg.mxu0
        %v609 = vmax.f32 %v483, 0.0
        %v610 = vmax.f32 %v486, 0.0
        %v611 = vmax.f32 %v491, 0.0
        %v612 = vmax.f32 %v494, 0.0
        %v613 = vmax.f32 %v499, 0.0
        %v614 = vmax.f32 %v502, 0.0
        %v615 = vmax.f32 %v507, 0.0
        %v616 = vmax.f32 %v510, 0.0
        %v617 = vmax.f32 %v515, 0.0
        %v618 = vmax.f32 %v518, 0.0
        %v619 = vmax.f32 %v523, 0.0
        %v620 = vmax.f32 %v526, 0.0
        %v621 = vmax.f32 %v531, 0.0
        %v622 = vmax.f32 %v534, 0.0
        %v623 = vmax.f32 %v539, 0.0
        %v624 = vmax.f32 %v542, 0.0
        %v625 = vmax.f32 %v547, 0.0
        %v626 = vmax.f32 %v550, 0.0
        %v627 = vmax.f32 %v555, 0.0
        %v628 = vmax.f32 %v558, 0.0
        %v629 = vmax.f32 %v563, 0.0
        %v630 = vmax.f32 %v566, 0.0
        %v631 = vmax.f32 %v571, 0.0
        %v632 = vmax.f32 %v574, 0.0
        %v633 = vmax.f32 %v579, 0.0
        %v634 = vmax.f32 %v582, 0.0
        %v635 = vmax.f32 %v587, 0.0
        %v636 = vmax.f32 %v590, 0.0
        %v637 = vmax.f32 %v595, 0.0
        %v638 = vmax.f32 %v598, 0.0
        %v639 = vmax.f32 %v603, 0.0
        %v640 = vmax.f32 %v606, 0.0
        %v641 = vld [vmem:[#allocation2] sm:$0xff]
        %v642 = vadd.f32 %v609, %v610
        %v643 = vadd.f32 %v642, %v611
        %v644 = vadd.f32 %v643, %v612
        %v645 = vadd.f32 %v644, %v613
        %v646 = vadd.f32 %v645, %v614
        %v647 = vadd.f32 %v646, %v615
        %v648 = vadd.f32 %v647, %v616
        %v649 = vadd.f32 %v648, %v617
        %v650 = vadd.f32 %v649, %v618
        %v651 = vadd.f32 %v650, %v619
        %v652 = vadd.f32 %v651, %v620
        %v653 = vadd.f32 %v652, %v621
        %v654 = vadd.f32 %v653, %v622
        %v655 = vadd.f32 %v654, %v623
        %v656 = vadd.f32 %v655, %v624
        %v657 = vadd.f32 %v656, %v625
        %v658 = vadd.f32 %v657, %v626
        %v659 = vadd.f32 %v658, %v627
        %v660 = vadd.f32 %v659, %v628
        %v661 = vadd.f32 %v660, %v629
        %v662 = vadd.f32 %v661, %v630
        %v663 = vadd.f32 %v662, %v631
        %v664 = vadd.f32 %v663, %v632
        %v665 = vadd.f32 %v664, %v633
        %v666 = vadd.f32 %v665, %v634
        %v667 = vadd.f32 %v666, %v635
        %v668 = vadd.f32 %v667, %v636
        %v669 = vadd.f32 %v668, %v637
        %v670 = vadd.f32 %v669, %v638
        %v671 = vadd.f32 %v670, %v639
        %v672 = vadd.f32 %v671, %v640
        %v673 = vadd.f32 %v641, %v672
        %674 = vst [vmem:[#allocation2] sm:$0xff] %v673
        // Predicated region
        $region45: #{tpu_custom_call.1} parent=39 // pred_check
          %p675 = pneg %p251
        $region46: #{tpu_custom_call.1} parent=39 // pred_check_branch
          %677 = sbr.rel (%p675) target = $region48
        $region47: #{tpu_custom_call.1} parent=39 // pred_region
          %v678 = vld [vmem:[#allocation2] sm:$0xff]
          %v679 = vrot.slane %v678, 4
          %v680 = vadd.f32 %v678, %v679
          %v681 = vrot.slane %v680, 2
          %v682 = vadd.f32 %v680, %v681
          %v683 = vrot.slane %v682, 1
          %v684 = vadd.f32 %v682, %v683
          %v685 = vpack.c.bf16 %v684, %v684
          %v686 = vld [vmem:[%s3] sm:$0xf]
          %v687 = vld [vmem:[%s3 + $0x4] sm:$0xf]
          %v688 = vld [vmem:[%s3 + $0x8] sm:$0xf]
          %v689 = vld [vmem:[%s3 + $0xc] sm:$0xf]
          %v690 = vld [vmem:[%s3 + $0x10] sm:$0xf]
          %v691 = vld [vmem:[%s3 + $0x14] sm:$0xf]
          %v692 = vld [vmem:[%s3 + $0x18] sm:$0xf]
          %v693 = vld [vmem:[%s3 + $0x1c] sm:$0xf]
          %v694 = vld [vmem:[%s3 + $0x20] sm:$0xf]
          %v695 = vld [vmem:[%s3 + $0x24] sm:$0xf]
          %v696 = vld [vmem:[%s3 + $0x28] sm:$0xf]
          %v697 = vld [vmem:[%s3 + $0x2c] sm:$0xf]
          %v698 = vld [vmem:[%s3 + $0x30] sm:$0xf]
          %v699 = vld [vmem:[%s3 + $0x34] sm:$0xf]
          %v700 = vld [vmem:[%s3 + $0x38] sm:$0xf]
          %v701 = vld [vmem:[%s3 + $0x3c] sm:$0xf]
          %v702 = vld [vmem:[%s4] sm:$0x1]
          %v719 = vunpack.c.l.b16 %v686
          %v720 = vunpack.c.l.b16 %v687
          %v721 = vunpack.c.l.b16 %v688
          %v722 = vunpack.c.l.b16 %v689
          %v723 = vunpack.c.l.b16 %v690
          %v724 = vunpack.c.l.b16 %v691
          %v725 = vunpack.c.l.b16 %v692
          %v726 = vunpack.c.l.b16 %v693
          %v727 = vunpack.c.l.b16 %v694
          %v728 = vunpack.c.l.b16 %v695
          %v729 = vunpack.c.l.b16 %v696
          %v730 = vunpack.c.l.b16 %v697
          %v731 = vunpack.c.l.b16 %v698
          %v732 = vunpack.c.l.b16 %v699
          %v733 = vunpack.c.l.b16 %v700
          %v734 = vunpack.c.l.b16 %v701
          %v735 = vpack.c.b16 %v720, %v719
          %v736 = vpack.c.b16 %v722, %v721
          %v737 = vpack.c.b16 %v724, %v723
          %v738 = vpack.c.b16 %v726, %v725
          %v739 = vpack.c.b16 %v728, %v727
          %v740 = vpack.c.b16 %v730, %v729
          %v741 = vpack.c.b16 %v732, %v731
          %v742 = vpack.c.b16 %v734, %v733
          %751 = vmatprep.subr.bf16.mxu0 0
          %752 = vmatpush1.bf16.msra.mxu0 %v742
          %753 = vmatprep.subr.bf16.mxu0 0
          %754 = vmatpush1.bf16.msra.mxu0 %v741
          %755 = vmatprep.subr.bf16.mxu0 0
          %756 = vmatpush1.bf16.msra.mxu0 %v740
          %757 = vmatprep.subr.bf16.mxu0 0
          %758 = vmatpush1.bf16.msra.mxu0 %v739
          %759 = vmatprep.subr.bf16.mxu0 0
          %760 = vmatpush1.bf16.msra.mxu0 %v738
          %761 = vmatprep.subr.bf16.mxu0 0
          %762 = vmatpush1.bf16.msra.mxu0 %v737
          %763 = vmatprep.subr.bf16.mxu0 0
          %764 = vmatpush1.bf16.msra.mxu0 %v736
          %765 = vmatprep.subr.bf16.mxu0 0
          %766 = vmatpush1.bf16.msra.mxu0 %v735
          %767 = vmatprep.subr.bf16.mxu0 0
          %768 = vmatpush2.bf16.msra.mxu0 0
          %769 = vmatprep.subr.bf16.mxu0 0
          %770 = vmatpush2.bf16.msra.mxu0 0
          %771 = vmatprep.subr.bf16.mxu0 0
          %772 = vmatpush2.bf16.msra.mxu0 0
          %773 = vmatprep.subr.bf16.mxu0 0
          %774 = vmatpush2.bf16.msra.mxu0 0
          %775 = vmatprep.subr.bf16.mxu0 0
          %776 = vmatpush2.bf16.msra.mxu0 0
          %777 = vmatprep.subr.bf16.mxu0 0
          %778 = vmatpush2.bf16.msra.mxu0 0
          %779 = vmatprep.subr.bf16.mxu0 0
          %780 = vmatpush2.bf16.msra.mxu0 0
          %781 = vmatprep.subr.bf16.mxu0 0
          %782 = vmatpush2.bf16.msra.mxu0 0
          %783 = vmatprep.mubr.bf16.mxu0 0
          %784 = vmatmul.mubr.bf16.gmra.mxu0 %v685
          %v785 = vpop.f32.mrf.mxu0
          %v786 = vadd.f32 %v702, %v785
          %v787 = vpop.f32.mrf.mxu0
          %v788 = vpop.f32.mrf.mxu0
          %v789 = vpop.f32.mrf.mxu0
          %790 = vdwg.mxu0
          %791 = vst [vmem:[%s239] sm:$0x1] %v786
        $region48: #{tpu_custom_call.1} parent=39 // pred_fallthru
          _
        %s792 = sand.u32 %s151, 1
        %s793 = scalar_lea.sflag [#allocation4], %s792
        %s794 = sand.u32 %s151, 1
        %s795 = scalar_lea.vmem [#allocation3], %s794
        // Predicated region
        $region49: #{tpu_custom_call.1} parent=39 // pred_check
          %p796 = pneg %p161
        $region50: #{tpu_custom_call.1} parent=39 // pred_check_branch
          %798 = sbr.rel (%p796) target = $region52
        $region51: #{tpu_custom_call.1} parent=39 // pred_region
          %s800 = ssub.s32 16, 16
          %801 = vsyncadd %s793, %s800
          %s802 = smul.addr %s23, 16
          %s803 = scalar_lea.hbm %s5, %s802
          %s805 = sshll.u32 %s795, 4
          %s806 = int_to_ptr.vmem [resolvable:$true] %s805
          %808 = dma.vmem_to_hbm [thread:$0]  %s806, 16, %s803, %s793
        $region52: #{tpu_custom_call.1} parent=39 // pred_fallthru
          _
      $region40: #{tpu_custom_call.1} parent=5 // pred_fallthru
        _
      %p809 = scmp.le.s32.totalorder 2, %s14
      // Predicated region
      $region53: #{tpu_custom_call.1} parent=5 // pred_check
        %p810 = pneg %p809
      $region54: #{tpu_custom_call.1} parent=5 // pred_check_branch
        %812 = sbr.rel (%p810) target = $region56
      $region55: #{tpu_custom_call.1} parent=5 // pred_region
        %s813 = ssub.s32 %s14, 2
        // Predicated region
        $region57: #{tpu_custom_call.1} parent=55 // pred_check
          %p814 = pneg %p167
        $region58: #{tpu_custom_call.1} parent=55 // pred_check_branch
          %816 = sbr.rel (%p814) target = $region60
        $region59: #{tpu_custom_call.1} parent=55 // pred_region
          %s817 = sand.u32 %s152, 1
          %s818 = scalar_lea.sflag [#allocation4], %s817
          %s819 = sand.u32 %s152, 1
          %s820 = scalar_lea.vmem [#allocation3], %s819
          %821 = dma.done %s818, 16
        $region60: #{tpu_custom_call.1} parent=55 // pred_fallthru
          _
      $region56: #{tpu_custom_call.1} parent=5 // pred_fallthru
        _
    $region6: #{tpu_custom_call.1} parent=1 // loop_footer
      %s18 = sadd.s32 1, %s14
    $region7: #{tpu_custom_call.1} parent=1 // loop_footer_branch
      %13 = sbr.rel target = $region3
    $region8: #{tpu_custom_call.1} parent=1 // loop_exit
      _
    %822 = vsyncpa [#allocation4], 1
    %s823 = scalar_lea.sflag [#allocation4], 1
    %824 = vsyncpa %s823, 1

</llo_original>
